<compile_context>
chip_gen: v6e
topology: v6e:2x2x1
jax: 0.10.0
libtpu: 0.0.40
codegen_flags: <defaults>
</compile_context>

<pallas_src>
import functools

import jax
import jax.numpy as jnp
from jax.experimental import pallas as pl
from jax.experimental.pallas import tpu as pltpu


def _pad1d_kernel(x_ref, o_ref, *, pad_size):
    # Two disjoint static-slice stores; no padded intermediate is built, every
    # output element is written exactly once.
    o_ref[:, :pad_size] = jnp.zeros((o_ref.shape[0], pad_size), dtype=o_ref.dtype)
    o_ref[:, pad_size:] = x_ref[...]


_SUBLANE_BY_ITEMSIZE = {1: 32, 2: 16, 4: 8, 8: 8}


def _sublane(itemsize):
    return _SUBLANE_BY_ITEMSIZE.get(itemsize, 8)


def _vmem_limit_bytes():
    """Scoped-VMEM limit: ~3/4 of physical VMEM (96 MiB v5e/v6e, 48 MiB v7x)."""
    try:
        phys = pltpu.get_tpu_info().vmem_capacity_bytes
    except Exception:
        phys = 64 * 1024 * 1024        # conservative fallback: v7x per-TensorCore
    return (phys * 3) // 4


def _rows_tile(n_rows, per_row_bytes, sublane, vmem_limit, min_blocks=4):
    """Pick the row tile.

    The VMEM byte budget alone sets the upper bound (no fixed row cap): the
    (in+out) block footprint is held to ~1/3 of the scoped limit so the
    double-buffered footprint stays around 2/3.  Tiles are rounded to the
    dtype's sublane multiple, and large problems are capped so the grid has at
    least `min_blocks` steps (megacore sharding on v7x + pipeline ramp).
    """
    block_budget = vmem_limit // 3                       # (in+out) bytes per block
    budget_rows = block_budget // max(1, per_row_bytes)
    budget_rows = max(sublane, (budget_rows // sublane) * sublane)
    if n_rows <= min(budget_rows, sublane * min_blocks):
        return n_rows                                    # small-R: one full-extent block
    target = -(-n_rows // min_blocks)                    # ceil(R / min_blocks)
    target = ((target + sublane - 1) // sublane) * sublane
    tile = min(budget_rows, target)
    return n_rows if tile >= n_rows else tile


def pad1d(x, pad_size, *, force_pallas=False, min_pallas_elems=1 << 15,
          rows_tile=None):
    """F.pad(x, [pad_size, 0]): left-pad the last axis of `x` with zeros."""
    if pad_size < 0:
        raise ValueError(
            f"pad1d only supports non-negative pad_size (got {pad_size}); "
            "negative pads mean trimming in PyTorch and are not implemented.")
    if pad_size == 0:
        return x

    *lead, T = x.shape
    T_out = T + pad_size
    out_full_shape = (*lead, T_out)
    itemsize = jnp.dtype(x.dtype).itemsize
    sublane = _sublane(itemsize)

    def _xla_pad():
        pads = [(0, 0)] * (x.ndim - 1) + [(pad_size, 0)]
        return jnp.pad(x, pads)

    # Tiny tensors: launch + per-step overhead dwarf the copy.  Lane-sparse
    # outputs (T_out < 128): the Pallas path would be dominated by masked
    # vst.msk partial stores -- let XLA fuse/handle the pad instead.
    # TODO(synk): for best perf, fuse this pad into the consumer kernel's
    # index_map / loads rather than materializing a padded array at all.
    if not force_pallas and (x.size < min_pallas_elems or T_out < 128):
        return _xla_pad()

    vmem_limit = _vmem_limit_bytes()
    per_row_bytes = (T + T_out) * itemsize

    # Very long last axis guard: blocks are full-width in T/T_out, so if even
    # a sublane-tall block overflows the budget, bail out to XLA.
    # TODO(synk): add a lane-axis (second grid dim) tiling variant for T that
    # does not fit VMEM at full width.
    if sublane * per_row_bytes > vmem_limit // 3:
        return _xla_pad()

    # Collapse leading dims into one row axis (free reshape outside the
    # kernel); rows map to sublanes, the padded axis maps to lanes.
    R = 1
    for d in lead:
        R *= d
    x2 = x.reshape(R, T)

    if rows_tile is None:
        rows_tile = _rows_tile(R, per_row_bytes, sublane, vmem_limit)
    grid = (pl.cdiv(R, rows_tile),)

    out2 = pl.pallas_call(
        functools.partial(_pad1d_kernel, pad_size=pad_size),
        out_shape=jax.ShapeDtypeStruct((R, T_out), x.dtype),
        grid=grid,
        in_specs=[pl.BlockSpec((rows_tile, T), lambda i: (i, 0))],
        out_specs=pl.BlockSpec((rows_tile, T_out), lambda i: (i, 0)),
        compiler_params=pltpu.CompilerParams(
            dimension_semantics=("parallel",),
            vmem_limit_bytes=int(vmem_limit),
        ),
        cost_estimate=pl.CostEstimate(
            flops=0, transcendentals=0,
            bytes_accessed=int(R * (T + T_out) * itemsize)),
    )(x2)

    return out2.reshape(out_full_shape)


class Pad1d:
    """Drop-in for the PyTorch Pad1d module: F.pad(x, [pad_size, 0])."""

    def __init__(self, pad_size):
        self.pad_size = pad_size

    def __call__(self, x, **kwargs):
        return pad1d(x, self.pad_size, **kwargs)


if __name__ == "__main__":
    key = jax.random.PRNGKey(0)

    # 1) Small spec shape, forced through the Pallas path (single block).
    B, C, T, pad_size = 2, 4, 16, 4
    x = jax.random.normal(key, (B, C, T), dtype=jnp.float32)
    mod = Pad1d(pad_size)
    out = jax.block_until_ready(mod(x, force_pallas=True))
    ref = jnp.pad(x, ((0, 0), (0, 0), (pad_size, 0)))
    assert out.shape == (B, C, T + pad_size), out.shape
    assert out.dtype == x.dtype
    assert jnp.array_equal(out, ref), "Pallas output mismatch (small, forced)"

    # 2) Same shape via the default wrapper (tiny / lane-sparse fallback).
    out_small = jax.block_until_ready(mod(x))
    assert jnp.array_equal(out_small, ref), "fallback path mismatch"

    # 3) Larger shape: auto row tiling (>= 4 grid blocks, partial last block).
    key2 = jax.random.PRNGKey(1)
    B2, C2, T2, pad2 = 3, 250, 96, 5          # R = 750 rows -> tile 192, 4 steps
    x2 = jax.random.normal(key2, (B2, C2, T2), dtype=jnp.float32)
    out2 = jax.block_until_ready(pad1d(x2, pad2, force_pallas=True))
    ref2 = jnp.pad(x2, ((0, 0), (0, 0), (pad2, 0)))
    assert out2.shape == (B2, C2, T2 + pad2), out2.shape
    assert jnp.array_equal(out2, ref2), "Pallas output mismatch (auto tiled)"

    # 4) bf16 input: exercises the packed-dtype (16-row sublane) tile rounding.
    x3 = x2.astype(jnp.bfloat16)
    out3 = jax.block_until_ready(pad1d(x3, pad2, force_pallas=True))
    ref3 = jnp.pad(x3, ((0, 0), (0, 0), (pad2, 0)))
    assert out3.dtype == jnp.bfloat16
    assert jnp.array_equal(out3, ref3), "Pallas output mismatch (bf16)"

    print("KERNEL_OK")
</pallas_src>

<mosaic_0001>
module attributes {stable_mosaic.version = 11 : i64} {
  func.func @_pad1d_kernel(%arg0: i32, %arg1: memref<8x16xf32, #tpu.memory_space<vmem>>, %arg2: memref<8x20xf32, #tpu.memory_space<vmem>>) attributes {dimension_semantics = [#tpu.dimension_semantics<parallel>], iteration_bounds = array<i64: 1>, scalar_prefetch = 0 : i64, scratch_operands = 0 : i64, tpu.core_type = #tpu.core_type<tc>, window_params = [{transform_indices = @transform_0, window_bounds = array<i64: 8, 16>}, {transform_indices = @transform_1, window_bounds = array<i64: 8, 20>}]} {
    %cst = arith.constant 0.000000e+00 : f32
    %0 = vector.broadcast %cst : f32 to vector<8x4xf32>
    %c0 = arith.constant 0 : index
    %c0_0 = arith.constant 0 : index
    %1 = vector.load %arg2[%c0, %c0_0] : memref<8x20xf32, #tpu.memory_space<vmem>>, vector<8x4xf32>
    tpu.vector_store %arg2[%c0, %c0_0], %0 {strides = array<i32>} : memref<8x20xf32, #tpu.memory_space<vmem>>, vector<8x4xf32>,
    %c0_1 = arith.constant 0 : index
    %c0_2 = arith.constant 0 : index
    %2 = vector.load %arg1[%c0_1, %c0_2] : memref<8x16xf32, #tpu.memory_space<vmem>>, vector<8x16xf32>
    %c0_3 = arith.constant 0 : index
    %c4 = arith.constant 4 : index
    %3 = vector.load %arg2[%c0_3, %c4] : memref<8x20xf32, #tpu.memory_space<vmem>>, vector<8x16xf32>
    tpu.vector_store %arg2[%c0_3, %c4], %2 {strides = array<i32>} : memref<8x20xf32, #tpu.memory_space<vmem>>, vector<8x16xf32>,
    return
  }
  func.func @transform_0(%arg0: i32) -> (i32, i32) {
    %c0_i32 = arith.constant 0 : i32
    %c0_i32_0 = arith.constant 0 : i32
    return %arg0, %c0_i32 : i32, i32
  }
  func.func @transform_1(%arg0: i32) -> (i32, i32) {
    %c0_i32 = arith.constant 0 : i32
    %c0_i32_0 = arith.constant 0 : i32
    return %arg0, %c0_i32 : i32, i32
  }
}

</mosaic_0001>

<llo_original>
// kernel: tpu_custom_call.1
$region0: #{tpu_custom_call.1}
  #allocation0 [shape = 'u32[]', space=smem, size = 0x4, offset = 0x4, fixed_abs, tag = 'smem constant byte address 0x4 - core index']
  #allocation1 [shape = 'u32[144,128]{1,0:T(1,128)}', space=vmem, size = 0x12000, scoped, tag = 'internal scratch']
  %s0 = inlined_call_operand.hbm [shape: f32[8,16], index: 0, kind: input, shape index: {}]
  %s1 = inlined_call_operand.hbm [shape: f32[8,20], index: 1, kind: output, shape index: {}]
  %s2 = sld [smem:[#allocation0]]
  $region18: #{tpu_custom_call.1} parent=0
    _
  %s4 = ssub.s32 1, %s2
  %s5 = scalar_select 0, %s4, %s2
  $region1: #{tpu_custom_call.1} parent=0
    #allocation2 [shape = 'u8[4096]{0}', space=vmem, size = 0x1000, scoped, tag = 'input window, operand 0, single buffered']
    #allocation3 [shape = 's32[1]{0}', space=sflag, size = 0x4, scoped, tag = 'scoped memory for tpu_custom_call.1']
    #allocation4 [shape = 's32[1]{0}', space=sflag, size = 0x4, scoped, tag = 'scoped memory for tpu_custom_call.1']
    #allocation5 [shape = 'u8[4096]{0}', space=vmem, size = 0x1000, scoped, tag = 'output window, operand 0, single buffered']
    %6 = vsyncpa [#allocation3], 0
    %7 = vsyncpa [#allocation4], 0
    // Predicated region
    $region2: #{tpu_custom_call.1} parent=1 // pred_check
      _
    $region3: #{tpu_custom_call.1} parent=1 // pred_check_branch
      %9 = sbr.rel (0) target = $region5
    $region4: #{tpu_custom_call.1} parent=1 // pred_region
      %s11 = ssub.s32 128, 128
      %12 = vsyncadd [#allocation3], %s11
      %s14 = sshll.u32 [#allocation2], 4
      %s15 = int_to_ptr.vmem [resolvable:$true] %s14
      %17 = dma.hbm_to_vmem [thread:$0]  %s0, 128, %s15, [#allocation3]
    $region5: #{tpu_custom_call.1} parent=1 // pred_fallthru
      _
    // Predicated region
    $region6: #{tpu_custom_call.1} parent=1 // pred_check
      _
    $region7: #{tpu_custom_call.1} parent=1 // pred_check_branch
      %19 = sbr.rel (0) target = $region9
    $region8: #{tpu_custom_call.1} parent=1 // pred_region
      %20 = dma.done [#allocation3], 128
    $region9: #{tpu_custom_call.1} parent=1 // pred_fallthru
      _
    %vm21 = vcmask 31744
    %22 = vst.msk [vmem:[#allocation5] sm:$0xff] %vm21, 0.0
    %v23 = vld [vmem:[#allocation2] sm:$0xff]
    %25 = vrot.lane.b32.xlu0 %v23, 4
    %v26 = vpop.permute.xlu0 %25
    %vm28 = vcmask 162848
    %29 = vst.msk [vmem:[#allocation5] sm:$0xff] %vm28, %v26
    // Predicated region
    $region10: #{tpu_custom_call.1} parent=1 // pred_check
      _
    $region11: #{tpu_custom_call.1} parent=1 // pred_check_branch
      %31 = sbr.rel (0) target = $region13
    $region12: #{tpu_custom_call.1} parent=1 // pred_region
      %s33 = ssub.s32 128, 128
      %34 = vsyncadd [#allocation4], %s33
      %s36 = sshll.u32 [#allocation5], 4
      %s37 = int_to_ptr.vmem [resolvable:$true] %s36
      %39 = dma.vmem_to_hbm [thread:$0]  %s37, 128, %s1, [#allocation4]
    $region13: #{tpu_custom_call.1} parent=1 // pred_fallthru
      _
    // Predicated region
    $region14: #{tpu_custom_call.1} parent=1 // pred_check
      _
    $region15: #{tpu_custom_call.1} parent=1 // pred_check_branch
      %41 = sbr.rel (0) target = $region17
    $region16: #{tpu_custom_call.1} parent=1 // pred_region
      %42 = dma.done [#allocation4], 128
    $region17: #{tpu_custom_call.1} parent=1 // pred_fallthru
      _
    %43 = vsyncpa [#allocation3], 1
    %44 = vsyncpa [#allocation4], 1

</llo_original>
